<compile_context>
chip_gen: v7x
topology: tpu7x:2x2x1
jax: 0.10.0
libtpu: 0.0.40
codegen_flags: <defaults>
</compile_context>

<pallas_src>
import jax
import jax.numpy as jnp
from jax.experimental import pallas as pl
from jax.experimental.pallas import tpu as pltpu


def _round_up(x, m):
    return ((x + m - 1) // m) * m


def _vmem_capacity_bytes():
    # Generation-aware VMEM capacity; conservative (v7x per-TC) fallback.
    try:
        return int(pltpu.get_tpu_info().vmem_capacity_bytes)
    except Exception:
        return 64 * 1024 * 1024


def _update_gate_kernel(x_ref, w_ref, b_ref, o_ref):
    # x_ref: (in_features, TN)           streamed activation tile (channel-first)
    # w_ref: (out_features, in_features) VMEM-resident PyTorch Linear weight
    # b_ref: (out_features, 1)           VMEM-resident bias column (f32)
    # o_ref: (out_features, TN)          output tile (channel-first)
    acc = jnp.dot(w_ref[...], x_ref[...], preferred_element_type=jnp.float32)
    acc = acc + b_ref[...]                      # lane-broadcast bias (f32)
    o_ref[...] = jax.nn.sigmoid(acc).astype(o_ref.dtype)


def update_gate(x, weight, bias, *, max_tn=8192):
    """UpdateGate forward.

    x:      (1, in_features, N)
    weight: (out_features, in_features)   (PyTorch Linear layout)
    bias:   (out_features,)
    returns (1, out_features, N)
    """
    assert x.ndim == 3 and x.shape[0] == 1
    _, in_features, n = x.shape
    out_features, w_in = weight.shape
    assert w_in == in_features

    xm = x[0]                                   # (in_features, N) -- no transpose
    bm = bias.reshape(out_features, 1).astype(jnp.float32)

    bpe_x = jnp.dtype(x.dtype).itemsize
    bpe_w = jnp.dtype(weight.dtype).itemsize

    vmem_cap = _vmem_capacity_bytes()
    # v7x (64 MiB/TC) -> 32 MiB working budget; v5e/v6e (128 MiB) -> 48 MiB.
    vmem_budget = min(vmem_cap // 2, 48 * 1024 * 1024)

    x_buffers = 3  # budget for up to triple-buffered streamed X
    if n <= 256:
        # Single block covering the whole sequence (block dim == full array dim
        # is always a legal layout, even when unaligned).
        n_tile = n
    else:
        # Resident weight/bias may still be double-buffered by the pipeline.
        fixed = 2 * (out_features * in_features * bpe_w + out_features * 4)
        per_col = x_buffers * in_features * bpe_x + 2 * out_features * bpe_x
        max_cols = max((vmem_budget - fixed) // per_col, 128)
        # Keep >= 4 grid steps: pipelining on single-TC chips, 2-way sharding on v7x.
        target = max(_round_up(pl.cdiv(n, 4), 128), 128)
        n_tile = min(max_cols, target, max_tn)
        n_tile = max((n_tile // 128) * 128, 128)  # always a 128-lane multiple

    grid_steps = pl.cdiv(n, n_tile)
    grid = (grid_steps,)

    x_spec_kwargs = {}
    if grid_steps >= 4:
        # Deeper buffering on the streamed input hides DMA issue latency; tiny
        # per-tile compute (small matmul + sigmoid) makes the DMA dominant.
        x_spec_kwargs["pipeline_mode"] = pl.Buffered(3)

    cost = pl.CostEstimate(
        flops=2 * n * in_features * out_features,
        transcendentals=n * out_features,
        bytes_accessed=(in_features * n + out_features * n) * bpe_x
        + out_features * in_features * bpe_w
        + out_features * 4,
    )

    out = pl.pallas_call(
        _update_gate_kernel,
        out_shape=jax.ShapeDtypeStruct((out_features, n), x.dtype),
        grid=grid,
        in_specs=[
            pl.BlockSpec((in_features, n_tile), lambda i: (0, i),
                         **x_spec_kwargs),                        # streamed X tile
            pl.BlockSpec((out_features, in_features), lambda i: (0, 0)),  # resident W
            pl.BlockSpec((out_features, 1), lambda i: (0, 0)),            # resident b
        ],
        out_specs=pl.BlockSpec((out_features, n_tile), lambda i: (0, i)),
        compiler_params=pltpu.CompilerParams(
            dimension_semantics=("parallel",),
            vmem_limit_bytes=min(vmem_budget + (8 << 20), vmem_cap),
        ),
        cost_estimate=cost,
    )(xm, weight, bm)

    return out[None, :, :]                      # (1, out_features, N) -- no slicing


def _reference(x, weight, bias):
    return jax.nn.sigmoid(x[0].T @ weight.T + bias).T[None, :, :]


if __name__ == "__main__":
    key = jax.random.PRNGKey(0)

    # Case 1: module-sized shapes (in=out=32, seq=8) -- single block.
    k_x, k_w, k_b, key = jax.random.split(key, 4)
    in_features, out_features, seq = 32, 32, 8
    x = jax.random.normal(k_x, (1, in_features, seq), dtype=jnp.float32)
    bound = 1.0 / (in_features ** 0.5)
    weight = jax.random.uniform(
        k_w, (out_features, in_features), minval=-bound, maxval=bound, dtype=jnp.float32
    )
    bias = jax.random.uniform(
        k_b, (out_features,), minval=-bound, maxval=bound, dtype=jnp.float32
    )
    out = update_gate(x, weight, bias)
    jax.block_until_ready(out)
    assert out.shape == (1, out_features, seq)
    assert jnp.allclose(out, _reference(x, weight, bias), atol=1e-5, rtol=1e-5)

    # Case 2: non-aligned features / non-128 sequence (partial boundary block).
    k_x2, k_w2, k_b2, key = jax.random.split(key, 4)
    in2, out2, seq2 = 20, 12, 300
    x2 = jax.random.normal(k_x2, (1, in2, seq2), dtype=jnp.float32)
    bound2 = 1.0 / (in2 ** 0.5)
    w2 = jax.random.uniform(k_w2, (out2, in2), minval=-bound2, maxval=bound2,
                            dtype=jnp.float32)
    b2 = jax.random.uniform(k_b2, (out2,), minval=-bound2, maxval=bound2,
                            dtype=jnp.float32)
    out2_arr = update_gate(x2, w2, b2)
    jax.block_until_ready(out2_arr)
    assert out2_arr.shape == (1, out2, seq2)
    assert jnp.allclose(out2_arr, _reference(x2, w2, b2), atol=1e-5, rtol=1e-5)

    # Case 3: longer sequence -- exercises large tiles, >=4 grid steps, Buffered(3).
    k_x3, k_w3, k_b3, key = jax.random.split(key, 4)
    in3, out3, seq3 = 32, 32, 4096
    x3 = jax.random.normal(k_x3, (1, in3, seq3), dtype=jnp.float32)
    bound3 = 1.0 / (in3 ** 0.5)
    w3 = jax.random.uniform(k_w3, (out3, in3), minval=-bound3, maxval=bound3,
                            dtype=jnp.float32)
    b3 = jax.random.uniform(k_b3, (out3,), minval=-bound3, maxval=bound3,
                            dtype=jnp.float32)
    out3_arr = update_gate(x3, w3, b3)
    jax.block_until_ready(out3_arr)
    assert out3_arr.shape == (1, out3, seq3)
    assert jnp.allclose(out3_arr, _reference(x3, w3, b3), atol=1e-5, rtol=1e-5)

    print("KERNEL_OK")
</pallas_src>

<mosaic_0001>
module attributes {stable_mosaic.version = 11 : i64} {
  func.func @_update_gate_kernel(%arg0: i32, %arg1: memref<32x8xf32, #tpu.memory_space<vmem>>, %arg2: memref<32x32xf32, #tpu.memory_space<vmem>>, %arg3: memref<32x1xf32, #tpu.memory_space<vmem>>, %arg4: memref<32x8xf32, #tpu.memory_space<vmem>>) attributes {dimension_semantics = [#tpu.dimension_semantics<parallel>], iteration_bounds = array<i64: 1>, scalar_prefetch = 0 : i64, scratch_operands = 0 : i64, tpu.core_type = #tpu.core_type<tc>, window_params = [{transform_indices = @transform_0, window_bounds = array<i64: 32, 8>}, {pipeline_mode = #tpu.pipeline_mode<synchronous>, transform_indices = @transform_1, window_bounds = array<i64: 32, 32>}, {pipeline_mode = #tpu.pipeline_mode<synchronous>, transform_indices = @transform_2, window_bounds = array<i64: 32, 1>}, {transform_indices = @transform_3, window_bounds = array<i64: 32, 8>}]} {
    %c0 = arith.constant 0 : index
    %c0_0 = arith.constant 0 : index
    %0 = vector.load %arg2[%c0, %c0_0] : memref<32x32xf32, #tpu.memory_space<vmem>>, vector<32x32xf32>
    %c0_1 = arith.constant 0 : index
    %c0_2 = arith.constant 0 : index
    %1 = vector.load %arg1[%c0_1, %c0_2] : memref<32x8xf32, #tpu.memory_space<vmem>>, vector<32x8xf32>
    %cst = arith.constant dense<0.000000e+00> : vector<32x8xf32>
    %2 = tpu.matmul %0, %1, %cst {dimension_numbers = #tpu.dot_dimension_numbers<[1], [0], [0], [1], [0, 0, 1, 1], [], []>} : vector<32x32xf32>, vector<32x8xf32>, vector<32x8xf32> -> vector<32x8xf32>
    %c0_3 = arith.constant 0 : index
    %c0_4 = arith.constant 0 : index
    %3 = vector.load %arg3[%c0_3, %c0_4] : memref<32x1xf32, #tpu.memory_space<vmem>>, vector<32x1xf32>
    %4 = vector.broadcast %3 : vector<32x1xf32> to vector<32x8xf32>
    %5 = arith.addf %2, %4 : vector<32x8xf32>
    %6 = arith.negf %5 : vector<32x8xf32>
    %7 = math.exp %6 : vector<32x8xf32>
    %cst_5 = arith.constant 1.000000e+00 : f32
    %8 = vector.broadcast %cst_5 : f32 to vector<32x8xf32>
    %9 = arith.addf %8, %7 : vector<32x8xf32>
    %10 = arith.divf %8, %9 : vector<32x8xf32>
    %c0_6 = arith.constant 0 : index
    %c0_7 = arith.constant 0 : index
    %11 = vector.load %arg4[%c0_6, %c0_7] : memref<32x8xf32, #tpu.memory_space<vmem>>, vector<32x8xf32>
    tpu.vector_store %arg4[%c0_6, %c0_7], %10 {strides = array<i32>} : memref<32x8xf32, #tpu.memory_space<vmem>>, vector<32x8xf32>,
    return
  }
  func.func @transform_0(%arg0: i32) -> (i32, i32) {
    %c0_i32 = arith.constant 0 : i32
    %c0_i32_0 = arith.constant 0 : i32
    return %c0_i32, %arg0 : i32, i32
  }
  func.func @transform_1(%arg0: i32) -> (i32, i32) {
    %c0_i32 = arith.constant 0 : i32
    %c0_i32_0 = arith.constant 0 : i32
    %c0_i32_1 = arith.constant 0 : i32
    return %c0_i32, %c0_i32_0 : i32, i32
  }
  func.func @transform_2(%arg0: i32) -> (i32, i32) {
    %c0_i32 = arith.constant 0 : i32
    %c0_i32_0 = arith.constant 0 : i32
    %c0_i32_1 = arith.constant 0 : i32
    return %c0_i32, %c0_i32_0 : i32, i32
  }
  func.func @transform_3(%arg0: i32) -> (i32, i32) {
    %c0_i32 = arith.constant 0 : i32
    %c0_i32_0 = arith.constant 0 : i32
    return %c0_i32, %arg0 : i32, i32
  }
}

</mosaic_0001>

<llo_original>
// kernel: tpu_custom_call.1
$region0: #{tpu_custom_call.1}
  #allocation0 [shape = 'u32[]', space=smem, size = 0x4, offset = 0x4, fixed_abs, tag = 'smem constant byte address 0x4 - core index']
  #allocation1 [shape = 'u32[144,128]{1,0:T(1,128)}', space=vmem, size = 0x12000, scoped, tag = 'internal scratch']
  %s0 = inlined_call_operand.vmem [shape: f32[32,8], index: 0, kind: input, shape index: {}]
  %s1 = inlined_call_operand.vmem [shape: f32[32,32], index: 1, kind: input, shape index: {}]
  %s2 = inlined_call_operand.vmem [shape: f32[32,1], index: 2, kind: input, shape index: {}]
  %s3 = inlined_call_operand.vmem [shape: f32[32,8], index: 3, kind: output, shape index: {}]
  %s4 = sld [smem:[#allocation0]]
  $region22: #{tpu_custom_call.1} parent=0
    _
  %s6 = ssub.s32 1, %s4
  %s7 = scalar_select 0, %s6, %s4
  // Predicated region
  $region2: #{tpu_custom_call.1} parent=0 // pred_check
    _
  $region3: #{tpu_custom_call.1} parent=0 // pred_check_branch
    %9 = sbr.rel (0) target = $region5
  $region4: #{tpu_custom_call.1} parent=0 // pred_region
    _
  $region5: #{tpu_custom_call.1} parent=0 // pred_fallthru
    _
  // Predicated region
  $region6: #{tpu_custom_call.1} parent=0 // pred_check
    _
  $region7: #{tpu_custom_call.1} parent=0 // pred_check_branch
    %11 = sbr.rel (0) target = $region9
  $region8: #{tpu_custom_call.1} parent=0 // pred_region
    _
  $region9: #{tpu_custom_call.1} parent=0 // pred_fallthru
    _
  // Predicated region
  $region10: #{tpu_custom_call.1} parent=0 // pred_check
    _
  $region11: #{tpu_custom_call.1} parent=0 // pred_check_branch
    %13 = sbr.rel (0) target = $region13
  $region12: #{tpu_custom_call.1} parent=0 // pred_region
    _
  $region13: #{tpu_custom_call.1} parent=0 // pred_fallthru
    _
  %v14 = vld [vmem:[%s1] sm:$0xff]
  %v15 = vld [vmem:[%s1 + $0x8] sm:$0xff]
  %v16 = vld [vmem:[%s1 + $0x10] sm:$0xff]
  %v17 = vld [vmem:[%s1 + $0x18] sm:$0xff]
  %v18 = vld [vmem:[%s0] sm:$0xff]
  %v19 = vld [vmem:[%s0 + $0x8] sm:$0xff]
  %v20 = vld [vmem:[%s0 + $0x10] sm:$0xff]
  %v21 = vld [vmem:[%s0 + $0x18] sm:$0xff]
  %v22 = vld [vmem:[%s2] sm:$0xff]
  %v23 = vld [vmem:[%s2 + $0x8] sm:$0xff]
  %v24 = vld [vmem:[%s2 + $0x10] sm:$0xff]
  %v25 = vld [vmem:[%s2 + $0x18] sm:$0xff]
  %27 = vset.pattern.permute.xlu0 0
  %28 = vperm.xlu0 %27, %v22
  %v29 = vpop.permute.xlu0 %28
  %32 = vset.pattern.permute.xlu0 0
  %33 = vperm.xlu0 %32, %v23
  %v34 = vpop.permute.xlu0 %33
  %37 = vset.pattern.permute.xlu0 0
  %38 = vperm.xlu0 %37, %v24
  %v39 = vpop.permute.xlu0 %38
  %42 = vset.pattern.permute.xlu0 0
  %43 = vperm.xlu0 %42, %v25
  %v44 = vpop.permute.xlu0 %43
  %vm46 = vcmask 261120
  %v48 = vsel %vm46, %v14, 0
  %v51 = vsel %vm46, %v15, 0
  %v54 = vsel %vm46, %v16, 0
  %v57 = vsel %vm46, %v17, 0
  %59 = vmatprep.subr.mxu0 0.0
  %60 = vmatpush1.msra.mxu0 %v18
  %61 = vmatprep.subr.mxu0 0.0
  %62 = vmatpush1.msra.mxu0 %v19
  %63 = vmatprep.subr.mxu0 0.0
  %64 = vmatpush1.msra.mxu0 %v20
  %65 = vmatprep.subr.mxu0 0.0
  %66 = vmatpush1.msra.mxu0 %v21
  %67 = vmatprep.subr.mxu0 0.0
  %68 = vmatpush1.msra.mxu0 0.0
  %69 = vmatprep.subr.mxu0 0.0
  %70 = vmatpush1.msra.mxu0 0.0
  %71 = vmatprep.subr.mxu0 0.0
  %72 = vmatpush1.msra.mxu0 0.0
  %73 = vmatprep.subr.mxu0 0.0
  %74 = vmatpush1.msra.mxu0 0.0
  %75 = vmatprep.subr.mxu0 0.0
  %76 = vmatpush1.msra.mxu0 0.0
  %77 = vmatprep.subr.mxu0 0.0
  %78 = vmatpush1.msra.mxu0 0.0
  %79 = vmatprep.subr.mxu0 0.0
  %80 = vmatpush1.msra.mxu0 0.0
  %81 = vmatprep.subr.mxu0 0.0
  %82 = vmatpush1.msra.mxu0 0.0
  %83 = vmatprep.subr.mxu0 0.0
  %84 = vmatpush1.msra.mxu0 0.0
  %85 = vmatprep.subr.mxu0 0.0
  %86 = vmatpush1.msra.mxu0 0.0
  %87 = vmatprep.subr.mxu0 0.0
  %88 = vmatpush1.msra.mxu0 0.0
  %89 = vmatprep.subr.mxu0 0.0
  %90 = vmatpush1.msra.mxu0 0.0
  %91 = vmatprep.subr.mxu0 0.0
  %92 = vmatpush1.msra.mxu0 0.0
  %93 = vmatprep.subr.mxu0 0.0
  %94 = vmatpush1.msra.mxu0 0.0
  %95 = vmatprep.subr.mxu0 0.0
  %96 = vmatpush1.msra.mxu0 0.0
  %97 = vmatprep.subr.mxu0 0.0
  %98 = vmatpush1.msra.mxu0 0.0
  %99 = vmatprep.subr.mxu0 0.0
  %100 = vmatpush1.msra.mxu0 0.0
  %101 = vmatprep.subr.mxu0 0.0
  %102 = vmatpush1.msra.mxu0 0.0
  %103 = vmatprep.subr.mxu0 0.0
  %104 = vmatpush1.msra.mxu0 0.0
  %105 = vmatprep.subr.mxu0 0.0
  %106 = vmatpush1.msra.mxu0 0.0
  %107 = vmatprep.subr.mxu0 0.0
  %108 = vmatpush1.msra.mxu0 0.0
  %109 = vmatprep.subr.mxu0 0.0
  %110 = vmatpush1.msra.mxu0 0.0
  %111 = vmatprep.subr.mxu0 0.0
  %112 = vmatpush1.msra.mxu0 0.0
  %113 = vmatprep.subr.mxu0 0.0
  %114 = vmatpush1.msra.mxu0 0.0
  %115 = vmatprep.subr.mxu0 0.0
  %116 = vmatpush1.msra.mxu0 0.0
  %117 = vmatprep.subr.mxu0 0.0
  %118 = vmatpush1.msra.mxu0 0.0
  %119 = vmatprep.subr.mxu0 0.0
  %120 = vmatpush1.msra.mxu0 0.0
  %121 = vmatprep.subr.mxu0 0.0
  %122 = vmatpush1.msra.mxu0 0.0
  %123 = vmatprep.mubr.f32.mxu0 0.0
  %124 = vmatmul.mubr.f32.gmra.mrb[0].mxu0 %v48
  %v125 = vpop.f32.mrb[0].mxu0
  %v126 = vadd.f32 %v29, %v125
  %v127 = vpop.f32.mrb[0].mxu0
  %128 = vmatprep.mubr.f32.mxu0 0.0
  %129 = vmatmul.mubr.f32.gmra.mrb[0].mxu0 %v51
  %v130 = vpop.f32.mrb[0].mxu0
  %v131 = vadd.f32 %v34, %v130
  %v132 = vpop.f32.mrb[0].mxu0
  %133 = vmatprep.mubr.f32.mxu0 0.0
  %134 = vmatmul.mubr.f32.gmra.mrb[0].mxu0 %v54
  %v135 = vpop.f32.mrb[0].mxu0
  %v136 = vadd.f32 %v39, %v135
  %v137 = vpop.f32.mrb[0].mxu0
  %138 = vmatprep.mubr.f32.mxu0 0.0
  %139 = vmatmul.mubr.f32.gmra.mrb[0].mxu0 %v57
  %v140 = vpop.f32.mrb[0].mxu0
  %v141 = vadd.f32 %v44, %v140
  %v142 = vpop.f32.mrb[0].mxu0
  %143 = vdwg.mxu0
  %v144 = vxor.u32 %v126, 2147483648
  %v145 = vxor.u32 %v131, 2147483648
  %v146 = vxor.u32 %v136, 2147483648
  %v147 = vxor.u32 %v141, 2147483648
  %v148 = vmul.f32 %v144, 1.442695
  %v149 = vpow.pop %v148
  %v150 = vmul.f32 %v145, 1.442695
  %v151 = vpow.pop %v150
  %v152 = vmul.f32 %v146, 1.442695
  %v153 = vpow.pop %v152
  %v154 = vmul.f32 %v147, 1.442695
  %v155 = vpow.pop %v154
  %v156 = vadd.f32 %v149, 1.0
  %v157 = vadd.f32 %v151, 1.0
  %v158 = vadd.f32 %v153, 1.0
  %v159 = vadd.f32 %v155, 1.0
  %v160 = vrcp.pop %v156
  %v161 = vmul.f32 1.0, %v160
  %v162 = vrcp.pop %v157
  %v163 = vmul.f32 1.0, %v162
  %v164 = vrcp.pop %v158
  %v165 = vmul.f32 1.0, %v164
  %v166 = vrcp.pop %v159
  %v167 = vmul.f32 1.0, %v166
  %vm168 = vcmask 64512
  %169 = vst.msk [vmem:[%s3] sm:$0xff] %vm168, %v161
  %170 = vst.msk [vmem:[%s3 + $0x8] sm:$0xff] %vm168, %v163
  %171 = vst.msk [vmem:[%s3 + $0x10] sm:$0xff] %vm168, %v165
  %172 = vst.msk [vmem:[%s3 + $0x18] sm:$0xff] %vm168, %v167
  // Predicated region
  $region14: #{tpu_custom_call.1} parent=0 // pred_check
    _
  $region15: #{tpu_custom_call.1} parent=0 // pred_check_branch
    %174 = sbr.rel (0) target = $region17
  $region16: #{tpu_custom_call.1} parent=0 // pred_region
    _
  $region17: #{tpu_custom_call.1} parent=0 // pred_fallthru
    _
  // Predicated region
  $region18: #{tpu_custom_call.1} parent=0 // pred_check
    _
  $region19: #{tpu_custom_call.1} parent=0 // pred_check_branch
    %176 = sbr.rel (0) target = $region21
  $region20: #{tpu_custom_call.1} parent=0 // pred_region
    _
  $region21: #{tpu_custom_call.1} parent=0 // pred_fallthru
    _

</llo_original>
